<compile_context>
chip_gen: v7x
topology: tpu7x:2x2x1
jax: 0.10.0
libtpu: 0.0.40
codegen_flags: <defaults>
</compile_context>

<pallas_src>
import functools

import jax
import jax.numpy as jnp
from jax.experimental import pallas as pl
from jax.experimental.pallas import tpu as pltpu

GAMMA = 2.0
ALPHA = 0.25

LANES = 128
MAX_TILE_ROWS = 4096       # 4096 * 128 * 4 B = 2 MiB per f32 input buffer
PAD_LOGIT = 100.0           # (x=100, t=1) contributes (essentially) zero focal loss


def _focal_loss_kernel(x_ref, t_ref, o_ref, *, gamma, alpha, rows_valid,
                       tile_rows, num_tiles, binary_targets):
    """Accumulate per-lane partial focal-loss sums into the resident (1, 128) block."""
    i = pl.program_id(0)

    @pl.when(i == 0)
    def _():
        o_ref[...] = jnp.zeros_like(o_ref)

    x = x_ref[...].astype(jnp.float32)
    t = t_ref[...].astype(jnp.float32)

    # Numerically-stable binary_cross_entropy_with_logits (matches PyTorch):
    #   bce = max(x, 0) - x*t + log1p(exp(-|x|))
    e = jnp.exp(-jnp.abs(x))          # EUP #1
    log1pe = jnp.log1p(e)             # EUP #2
    bce = jnp.maximum(x, 0.0) - x * t + log1pe

    if binary_targets:
        # For t in {0, 1}:  pt = exp(-bce) == [sign(x) agrees with t ? 1 : e] / (1 + e)
        # -> reuses e and saves the 3rd EUP exp per element.
        sign = 2.0 * t - 1.0
        num = jnp.where(x * sign >= 0.0, 1.0, e)
        # approx=True is a further EUP saving if the caller's tolerance allows it.
        pt = num * pl.reciprocal(1.0 + e, approx=False)
    else:
        pt = jnp.exp(-bce)            # exact original path for soft targets

    omp = 1.0 - pt

    # Trace-time specialization: avoid a float pow for the common gammas.
    if gamma == 2.0:
        mod = omp * omp
    elif gamma == 1.0:
        mod = omp
    elif gamma == 0.0:
        mod = jnp.ones_like(omp)
    else:
        mod = jnp.maximum(omp, 0.0) ** gamma   # clamp: pow of a negative base is NaN

    fl = (alpha * mod) * bce

    ragged = (rows_valid % tile_rows) != 0     # trace-time Python bool
    if ragged:
        last = num_tiles - 1
        rows_in_last = rows_valid - last * tile_rows   # static

        @pl.when(i == last)
        def _():
            # Only the last (partial, out-of-bounds) tile pays for the row mask.
            rid = jax.lax.broadcasted_iota(jnp.int32, fl.shape, 0)
            flm = jnp.where(rid < rows_in_last, fl, 0.0)
            o_ref[...] += jnp.sum(flm, axis=0, keepdims=True)

        @pl.when(i != last)
        def _():
            o_ref[...] += jnp.sum(fl, axis=0, keepdims=True)
    else:
        o_ref[...] += jnp.sum(fl, axis=0, keepdims=True)


def focal_loss(inputs, targets, gamma=GAMMA, alpha=ALPHA, *,
               binary_targets=True, max_tile_rows=MAX_TILE_ROWS):
    """Pallas equivalent of FocalLoss(gamma, alpha)(inputs, targets) -> scalar mean."""
    x = inputs.reshape(-1)                       # free bitcast; keep native dtype
    t = targets.reshape(-1)
    if not jnp.issubdtype(t.dtype, jnp.floating):
        t = t.astype(jnp.bfloat16)               # bool/int targets: 2 B/elem, not 4
    n = x.shape[0]

    # Lane alignment: only pad when n is not a multiple of 128 (<=127 elements).
    # Padded (x=100, t=1) elements contribute zero focal loss, so no extra masking.
    # TODO(synk): a fully 1-D kernel layout could avoid even this rare copy.
    rem = n % LANES
    if rem:
        pad = LANES - rem
        x = jnp.pad(x, (0, pad), constant_values=PAD_LOGIT)
        t = jnp.pad(t, (0, pad), constant_values=1)

    rows = x.shape[0] // LANES
    x2 = x.reshape(rows, LANES)                  # free bitcast (row-major)
    t2 = t.reshape(rows, LANES)

    # Row tiling: a single full-extent tile when it fits (exempt from the (8,128)
    # rule), otherwise max_tile_rows rounded to the sublane multiple required by
    # the narrowest dtype in flight.  The last tile may be partial (masked above).
    if rows <= max_tile_rows:
        tile_rows = rows
    else:
        sub = 8
        for a in (x2, t2):
            if a.dtype.itemsize == 2:
                sub = max(sub, 16)
            elif a.dtype.itemsize == 1:
                sub = max(sub, 32)
        tile_rows = (max_tile_rows // sub) * sub
        assert tile_rows >= sub, "max_tile_rows too small for the input dtypes"
    num_tiles = pl.cdiv(rows, tile_rows)

    kernel = functools.partial(
        _focal_loss_kernel, gamma=gamma, alpha=alpha, rows_valid=rows,
        tile_rows=tile_rows, num_tiles=num_tiles, binary_targets=binary_targets)

    bytes_accessed = (x2.size * x2.dtype.itemsize
                      + t2.size * t2.dtype.itemsize
                      + 4 * LANES)

    partial_sums = pl.pallas_call(
        kernel,
        out_shape=jax.ShapeDtypeStruct((1, LANES), jnp.float32),
        grid=(num_tiles,),
        in_specs=[
            pl.BlockSpec((tile_rows, LANES), lambda i: (i, 0)),
            pl.BlockSpec((tile_rows, LANES), lambda i: (i, 0)),
        ],
        out_specs=pl.BlockSpec((1, LANES), lambda i: (0, 0)),
        compiler_params=pltpu.CompilerParams(
            dimension_semantics=("arbitrary",),
            vmem_limit_bytes=48 * 1024 * 1024,   # v7x-safe (64 MiB physical)
        ),
        cost_estimate=pl.CostEstimate(
            flops=20 * n, transcendentals=2 * n, bytes_accessed=bytes_accessed),
    )(x2, t2)

    # Tiny finalize: combine the per-lane partials and take the mean.
    return jnp.sum(partial_sums) / jnp.float32(n)


def _focal_loss_ref(inputs, targets, gamma=GAMMA, alpha=ALPHA):
    x = inputs.reshape(-1).astype(jnp.float32)
    t = targets.reshape(-1).astype(jnp.float32)
    bce = jnp.maximum(x, 0.0) - x * t + jnp.log1p(jnp.exp(-jnp.abs(x)))
    pt = jnp.exp(-bce)
    return jnp.mean(alpha * (1.0 - pt) ** gamma * bce)


if __name__ == "__main__":
    key = jax.random.PRNGKey(0)
    k1, k2, k3, k4 = jax.random.split(key, 4)

    # Small NCHW-like logits and binary targets (lane-aligned, single-tile path).
    inputs = jax.random.normal(k1, (2, 4, 16, 16), dtype=jnp.float32)
    targets = (jax.random.uniform(k2, (2, 4, 16, 16)) > 0.5).astype(jnp.float32)

    loss = focal_loss(inputs, targets)
    jax.block_until_ready(loss)
    ref = _focal_loss_ref(inputs, targets)
    assert jnp.allclose(loss, ref, rtol=1e-5, atol=1e-6), (loss, ref)

    # Ragged / multi-tile path: odd shape exercises the lane pad, the partial
    # (out-of-bounds) last block and the in-kernel row mask.
    inputs2 = jax.random.normal(k3, (2, 3, 30, 31), dtype=jnp.float32)
    targets2 = (jax.random.uniform(k4, (2, 3, 30, 31)) > 0.5).astype(jnp.float32)

    loss2 = focal_loss(inputs2, targets2, max_tile_rows=16)
    jax.block_until_ready(loss2)
    ref2 = _focal_loss_ref(inputs2, targets2)
    assert jnp.allclose(loss2, ref2, rtol=1e-5, atol=1e-6), (loss2, ref2)

    print("KERNEL_OK")
</pallas_src>

<mosaic_0001>
module attributes {stable_mosaic.version = 11 : i64} {
  func.func @_focal_loss_kernel(%arg0: i32, %arg1: memref<16x128xf32, #tpu.memory_space<vmem>>, %arg2: memref<16x128xf32, #tpu.memory_space<vmem>>, %arg3: memref<1x128xf32, #tpu.memory_space<vmem>>) attributes {dimension_semantics = [#tpu.dimension_semantics<arbitrary>], iteration_bounds = array<i64: 1>, scalar_prefetch = 0 : i64, scratch_operands = 0 : i64, tpu.core_type = #tpu.core_type<tc>, window_params = [{transform_indices = @transform_0, window_bounds = array<i64: 16, 128>}, {transform_indices = @transform_1, window_bounds = array<i64: 16, 128>}, {pipeline_mode = #tpu.pipeline_mode<synchronous>, transform_indices = @transform_2, window_bounds = array<i64: 1, 128>}]} {
    %c0_i32 = arith.constant 0 : i32
    %0 = arith.cmpi eq, %arg0, %c0_i32 : i32
    %1 = arith.extui %0 : i1 to i32
    %c0_i32_0 = arith.constant 0 : i32
    %2 = arith.cmpi ne, %1, %c0_i32_0 : i32
    scf.if %2 {
      %cst_17 = arith.constant 0.000000e+00 : f32
      %39 = vector.broadcast %cst_17 : f32 to vector<1x128xf32>
      %c0_18 = arith.constant 0 : index
      %c0_19 = arith.constant 0 : index
      %40 = vector.load %arg3[%c0_18, %c0_19] : memref<1x128xf32, #tpu.memory_space<vmem>>, vector<1x128xf32>
      tpu.vector_store %arg3[%c0_18, %c0_19], %39 {strides = array<i32>} : memref<1x128xf32, #tpu.memory_space<vmem>>, vector<1x128xf32>,
    } else {
    }
    %c0 = arith.constant 0 : index
    %c0_1 = arith.constant 0 : index
    %3 = vector.load %arg1[%c0, %c0_1] : memref<16x128xf32, #tpu.memory_space<vmem>>, vector<16x128xf32>
    %c0_2 = arith.constant 0 : index
    %c0_3 = arith.constant 0 : index
    %4 = vector.load %arg2[%c0_2, %c0_3] : memref<16x128xf32, #tpu.memory_space<vmem>>, vector<16x128xf32>
    %5 = math.absf %3 : vector<16x128xf32>
    %cst = arith.constant 0.000000e+00 : f32
    %6 = vector.broadcast %cst : f32 to vector<16x128xf32>
    %7 = arith.subf %6, %5 : vector<16x128xf32>
    %8 = math.exp %7 : vector<16x128xf32>
    %9 = math.log1p %8 : vector<16x128xf32>
    %cst_4 = arith.constant 0.000000e+00 : f32
    %10 = vector.broadcast %cst_4 : f32 to vector<16x128xf32>
    %11 = arith.maximumf %3, %10 : vector<16x128xf32>
    %12 = arith.mulf %3, %4 : vector<16x128xf32>
    %13 = arith.subf %11, %12 : vector<16x128xf32>
    %14 = arith.addf %13, %9 : vector<16x128xf32>
    %cst_5 = arith.constant 2.000000e+00 : f32
    %15 = vector.broadcast %cst_5 : f32 to vector<16x128xf32>
    %16 = arith.mulf %15, %4 : vector<16x128xf32>
    %cst_6 = arith.constant 1.000000e+00 : f32
    %17 = vector.broadcast %cst_6 : f32 to vector<16x128xf32>
    %18 = arith.subf %16, %17 : vector<16x128xf32>
    %19 = arith.mulf %3, %18 : vector<16x128xf32>
    %cst_7 = arith.constant 0.000000e+00 : f32
    %20 = vector.broadcast %cst_7 : f32 to vector<16x128xf32>
    %21 = arith.cmpf oge, %19, %20 : vector<16x128xf32>
    %cst_8 = arith.constant 1.000000e+00 : f32
    %22 = vector.broadcast %cst_8 : f32 to vector<16x128xf32>
    %23 = arith.select %21, %22, %8 : vector<16x128xi1>, vector<16x128xf32>
    %cst_9 = arith.constant 1.000000e+00 : f32
    %24 = vector.broadcast %cst_9 : f32 to vector<16x128xf32>
    %25 = arith.addf %24, %8 : vector<16x128xf32>
    %26 = tpu.reciprocal %25 : vector<16x128xf32> -> vector<16x128xf32>
    %27 = arith.mulf %23, %26 : vector<16x128xf32>
    %cst_10 = arith.constant 1.000000e+00 : f32
    %28 = vector.broadcast %cst_10 : f32 to vector<16x128xf32>
    %29 = arith.subf %28, %27 : vector<16x128xf32>
    %30 = arith.mulf %29, %29 : vector<16x128xf32>
    %cst_11 = arith.constant 2.500000e-01 : f32
    %31 = vector.broadcast %cst_11 : f32 to vector<16x128xf32>
    %32 = arith.mulf %31, %30 : vector<16x128xf32>
    %33 = arith.mulf %32, %14 : vector<16x128xf32>
    %c0_12 = arith.constant 0 : index
    %c0_13 = arith.constant 0 : index
    %34 = vector.load %arg3[%c0_12, %c0_13] : memref<1x128xf32, #tpu.memory_space<vmem>>, vector<1x128xf32>
    %cst_14 = arith.constant dense<0.000000e+00> : vector<128xf32>
    %35 = vector.multi_reduction <add>, %33, %cst_14 [0] : vector<16x128xf32> to vector<128xf32>
    %36 = vector.shape_cast %35 : vector<128xf32> to vector<1x128xf32>
    %37 = arith.addf %34, %36 : vector<1x128xf32>
    %c0_15 = arith.constant 0 : index
    %c0_16 = arith.constant 0 : index
    %38 = vector.load %arg3[%c0_15, %c0_16] : memref<1x128xf32, #tpu.memory_space<vmem>>, vector<1x128xf32>
    tpu.vector_store %arg3[%c0_15, %c0_16], %37 {strides = array<i32>} : memref<1x128xf32, #tpu.memory_space<vmem>>, vector<1x128xf32>,
    return
  }
  func.func @transform_0(%arg0: i32) -> (i32, i32) {
    %c0_i32 = arith.constant 0 : i32
    %c0_i32_0 = arith.constant 0 : i32
    return %arg0, %c0_i32 : i32, i32
  }
  func.func @transform_1(%arg0: i32) -> (i32, i32) {
    %c0_i32 = arith.constant 0 : i32
    %c0_i32_0 = arith.constant 0 : i32
    return %arg0, %c0_i32 : i32, i32
  }
  func.func @transform_2(%arg0: i32) -> (i32, i32) {
    %c0_i32 = arith.constant 0 : i32
    %c0_i32_0 = arith.constant 0 : i32
    %c0_i32_1 = arith.constant 0 : i32
    return %c0_i32, %c0_i32_0 : i32, i32
  }
}

</mosaic_0001>

<llo_original>
// kernel: tpu_custom_call.1
$region0: #{tpu_custom_call.1}
  #allocation0 [shape = 'u32[]', space=smem, size = 0x4, offset = 0x4, fixed_abs, tag = 'smem constant byte address 0x4 - core index']
  #allocation1 [shape = 'u32[144,128]{1,0:T(1,128)}', space=vmem, size = 0x12000, scoped, tag = 'internal scratch']
  %s0 = inlined_call_operand.hbm [shape: f32[16,128], index: 0, kind: input, shape index: {}]
  %s1 = inlined_call_operand.hbm [shape: f32[16,128], index: 1, kind: input, shape index: {}]
  %s2 = inlined_call_operand.hbm [shape: f32[1,128], index: 2, kind: output, shape index: {}]
  %s3 = sld [smem:[#allocation0]]
  $region30: #{tpu_custom_call.1} parent=0
    _
  %s5 = ssub.s32 1, %s3
  %s6 = scalar_select 0, %s5, %s3
  $region1: #{tpu_custom_call.1} parent=0
    #allocation2 [shape = 'u8[8192]{0}', space=vmem, size = 0x2000, scoped, tag = 'input window, operand 0, single buffered']
    #allocation3 [shape = 's32[1]{0}', space=sflag, size = 0x4, scoped, tag = 'scoped memory for tpu_custom_call.1']
    #allocation4 [shape = 's32[1]{0}', space=sflag, size = 0x4, scoped, tag = 'scoped memory for tpu_custom_call.1']
    #allocation5 [shape = 'u8[8192]{0}', space=vmem, size = 0x2000, scoped, tag = 'input window, operand 1, single buffered']
    #allocation6 [shape = 's32[1]{0}', space=sflag, size = 0x4, scoped, tag = 'scoped memory for tpu_custom_call.1']
    #allocation7 [shape = 'u8[512]{0}', space=vmem, size = 0x400, scoped, tag = 'output window, operand 0, single buffered']
    %7 = vsyncpa [#allocation3], 0
    %8 = vsyncpa [#allocation6], 0
    %9 = vsyncpa [#allocation4], 0
    // Predicated region
    $region2: #{tpu_custom_call.1} parent=1 // pred_check
      _
    $region3: #{tpu_custom_call.1} parent=1 // pred_check_branch
      %11 = sbr.rel (0) target = $region5
    $region4: #{tpu_custom_call.1} parent=1 // pred_region
      %s13 = ssub.s32 256, 256
      %14 = vsyncadd [#allocation3], %s13
      %s15 = sshll.u32 [#allocation2], 4
      %s16 = int_to_ptr.vmem [resolvable:$true] %s15
      %21 = dma.hbm_to_vmem [thread:$0]  %s0, 256, %s16, [#allocation3], 128, 128, 8
    $region5: #{tpu_custom_call.1} parent=1 // pred_fallthru
      _
    // Predicated region
    $region6: #{tpu_custom_call.1} parent=1 // pred_check
      _
    $region7: #{tpu_custom_call.1} parent=1 // pred_check_branch
      %23 = sbr.rel (0) target = $region9
    $region8: #{tpu_custom_call.1} parent=1 // pred_region
      %s25 = ssub.s32 256, 256
      %26 = vsyncadd [#allocation6], %s25
      %s27 = sshll.u32 [#allocation5], 4
      %s28 = int_to_ptr.vmem [resolvable:$true] %s27
      %33 = dma.hbm_to_vmem [thread:$0]  %s1, 256, %s28, [#allocation6], 128, 128, 8
    $region9: #{tpu_custom_call.1} parent=1 // pred_fallthru
      _
    // Predicated region
    $region10: #{tpu_custom_call.1} parent=1 // pred_check
      _
    $region11: #{tpu_custom_call.1} parent=1 // pred_check_branch
      %35 = sbr.rel (0) target = $region13
    $region12: #{tpu_custom_call.1} parent=1 // pred_region
      %36 = dma.done [#allocation3], 256
    $region13: #{tpu_custom_call.1} parent=1 // pred_fallthru
      _
    // Predicated region
    $region14: #{tpu_custom_call.1} parent=1 // pred_check
      _
    $region15: #{tpu_custom_call.1} parent=1 // pred_check_branch
      %38 = sbr.rel (0) target = $region17
    $region16: #{tpu_custom_call.1} parent=1 // pred_region
      %39 = dma.done [#allocation6], 256
    $region17: #{tpu_custom_call.1} parent=1 // pred_fallthru
      _
    %p40 = scmp.eq.s32.totalorder 0, 0
    // Predicated region
    $region18: #{tpu_custom_call.1} parent=1 // pred_check
      %p41 = pneg %p40
    $region19: #{tpu_custom_call.1} parent=1 // pred_check_branch
      %43 = sbr.rel (%p41) target = $region21
    $region20: #{tpu_custom_call.1} parent=1 // pred_region
      %44 = vst [vmem:[#allocation7] sm:$0x1] 0.0
    $region21: #{tpu_custom_call.1} parent=1 // pred_fallthru
      _
    %v45 = vld [vmem:[#allocation2] sm:$0xff]
    %v46 = vld [vmem:[#allocation2 + $0x8] sm:$0xff]
    %v47 = vld [vmem:[#allocation5] sm:$0xff]
    %v48 = vld [vmem:[#allocation5 + $0x8] sm:$0xff]
    %v49 = vand.u32 2147483647, %v45
    %v50 = vand.u32 2147483647, %v46
    %v51 = vsub.f32 0.0, %v49
    %v52 = vsub.f32 0.0, %v50
    %v53 = vmul.f32 %v51, 1.442695
    %v54 = vpow.pop %v53
    %v55 = vmul.f32 %v52, 1.442695
    %v56 = vpow.pop %v55
    %v57 = vadd.f32 %v54, 1.0
    %v58 = vlog2.pop %v57
    %v59 = vmul.f32 %v58, 0.6931472
    %v60 = vmul.f32 -0.5, %v54
    %v61 = vadd.f32 %v60, 1.0
    %v62 = vmul.f32 %v61, %v54
    %v63 = vand.u32 2147483647, %v54
    %vm64 = vcmp.lt.f32.partialorder %v63, 0.0004427343
    %v65 = vsel %vm64, %v62, %v59
    %v66 = vadd.f32 %v56, 1.0
    %v67 = vlog2.pop %v66
    %v68 = vmul.f32 %v67, 0.6931472
    %v69 = vmul.f32 -0.5, %v56
    %v70 = vadd.f32 %v69, 1.0
    %v71 = vmul.f32 %v70, %v56
    %v72 = vand.u32 2147483647, %v56
    %vm73 = vcmp.lt.f32.partialorder %v72, 0.0004427343
    %v74 = vsel %vm73, %v71, %v68
    %v75 = vmax.f32 %v45, 0.0
    %v76 = vmax.f32 %v46, 0.0
    %v77 = vmul.f32 %v45, %v47
    %v78 = vmul.f32 %v46, %v48
    %v79 = vsub.f32 %v75, %v77
    %v80 = vsub.f32 %v76, %v78
    %v81 = vadd.f32 %v79, %v65
    %v82 = vadd.f32 %v80, %v74
    %v83 = vmul.f32 %v47, 2.0
    %v84 = vmul.f32 %v48, 2.0
    %v85 = vsub.f32 %v83, 1.0
    %v86 = vsub.f32 %v84, 1.0
    %v87 = vmul.f32 %v45, %v85
    %v88 = vmul.f32 %v46, %v86
    %vm89 = vcmp.ge.f32.partialorder %v87, 0.0
    %vm90 = vcmp.ge.f32.partialorder %v88, 0.0
    %v91 = vsel %vm89, 1.0, %v54
    %v92 = vsel %vm90, 1.0, %v56
    %v93 = vadd.f32 %v54, 1.0
    %v94 = vadd.f32 %v56, 1.0
    %v95 = vrcp.pop %v93
    %v96 = vrcp.pop %v94
    %v97 = vmul.f32 %v91, %v95
    %v98 = vmul.f32 %v92, %v96
    %v99 = vsub.f32 1.0, %v97
    %v100 = vsub.f32 1.0, %v98
    %v101 = vmul.f32 %v99, %v99
    %v102 = vmul.f32 %v100, %v100
    %v103 = vmul.f32 %v101, 0.25
    %v104 = vmul.f32 %v102, 0.25
    %v105 = vmul.f32 %v103, %v81
    %v106 = vmul.f32 %v104, %v82
    %v107 = vld [vmem:[#allocation7] sm:$0x1]
    %v108 = vadd.f32 %v105, %v106
    %v109 = vrot.slane %v108, 4
    %v110 = vadd.f32 %v108, %v109
    %v111 = vrot.slane %v110, 2
    %v112 = vadd.f32 %v110, %v111
    %v113 = vrot.slane %v112, 1
    %v114 = vadd.f32 %v112, %v113
    %v115 = vadd.f32 %v107, %v114
    %116 = vst [vmem:[#allocation7] sm:$0x1] %v115
    // Predicated region
    $region22: #{tpu_custom_call.1} parent=1 // pred_check
      _
    $region23: #{tpu_custom_call.1} parent=1 // pred_check_branch
      %118 = sbr.rel (0) target = $region25
    $region24: #{tpu_custom_call.1} parent=1 // pred_region
      %s120 = ssub.s32 16, 16
      %121 = vsyncadd [#allocation4], %s120
      %s123 = sshll.u32 [#allocation7], 4
      %s124 = int_to_ptr.vmem [resolvable:$true] %s123
      %126 = dma.vmem_to_hbm [thread:$0]  %s124, 16, %s2, [#allocation4]
    $region25: #{tpu_custom_call.1} parent=1 // pred_fallthru
      _
    // Predicated region
    $region26: #{tpu_custom_call.1} parent=1 // pred_check
      _
    $region27: #{tpu_custom_call.1} parent=1 // pred_check_branch
      %128 = sbr.rel (0) target = $region29
    $region28: #{tpu_custom_call.1} parent=1 // pred_region
      %129 = dma.done [#allocation4], 16
    $region29: #{tpu_custom_call.1} parent=1 // pred_fallthru
      _
    %130 = vsyncpa [#allocation3], 1
    %131 = vsyncpa [#allocation6], 1
    %132 = vsyncpa [#allocation4], 1

</llo_original>
